<compile_context>
chip_gen: v7x
topology: tpu7x:2x2x1
jax: 0.10.0
libtpu: 0.0.40
codegen_flags: <defaults>
</compile_context>

<pallas_src>
import functools

import jax
import jax.numpy as jnp
import numpy as np
from jax.experimental import pallas as pl
from jax.experimental.pallas import tpu as pltpu


# ----------------------------- parameter setup ------------------------------

SAMPLE_RATE = 16000
N_MELS = 80
WIN_LENGTH = 400
HOP_LENGTH = 160
N_FFT = 512
N_FREQS = N_FFT // 2 + 1       # 257 (onesided)
N_FREQS_EFF = N_FFT // 2       # 256: Nyquist bin dropped (exact for f_max=sr/2)
N_MELS_PAD = 128               # lane-dense padded mel axis


def _hann_window(win_length: int) -> np.ndarray:
    # torch.hann_window(win_length, periodic=True)
    n = np.arange(win_length, dtype=np.float64)
    return 0.5 * (1.0 - np.cos(2.0 * np.pi * n / win_length))


def _padded_window(n_fft: int, win_length: int) -> np.ndarray:
    # torch.stft centers a shorter window inside n_fft with zero padding.
    w = _hann_window(win_length)
    left = (n_fft - win_length) // 2
    right = n_fft - win_length - left
    return np.pad(w, (left, right))


def _dft_matrices(n_fft: int, n_freqs: int, window: np.ndarray):
    # Windowed real-input DFT basis folded with the analysis window:
    #   re = frame @ (diag(window) @ cos),  im = frame @ (diag(window) @ (-sin))
    n = np.arange(n_fft, dtype=np.float64)[:, None]
    k = np.arange(n_freqs, dtype=np.float64)[None, :]
    ang = 2.0 * np.pi * n * k / n_fft
    wc = window[:, None] * np.cos(ang)
    ws = window[:, None] * (-np.sin(ang))
    return wc.astype(np.float32), ws.astype(np.float32)


def _mel_filterbank(n_freqs: int, n_mels: int, sample_rate: int) -> np.ndarray:
    # torchaudio.functional.melscale_fbanks(f_min=0, f_max=sr/2, 'htk', norm=None)
    f_min, f_max = 0.0, sample_rate / 2.0

    def hz_to_mel(f):
        return 2595.0 * np.log10(1.0 + f / 700.0)

    def mel_to_hz(m):
        return 700.0 * (10.0 ** (m / 2595.0) - 1.0)

    all_freqs = np.linspace(0.0, sample_rate / 2.0, n_freqs)
    m_pts = np.linspace(hz_to_mel(f_min), hz_to_mel(f_max), n_mels + 2)
    f_pts = mel_to_hz(m_pts)

    f_diff = f_pts[1:] - f_pts[:-1]                      # (n_mels+1,)
    slopes = f_pts[None, :] - all_freqs[:, None]         # (n_freqs, n_mels+2)
    down = -slopes[:, :-2] / f_diff[:-1]                 # (n_freqs, n_mels)
    up = slopes[:, 2:] / f_diff[1:]                      # (n_freqs, n_mels)
    fb = np.maximum(0.0, np.minimum(down, up))
    return fb.astype(np.float32)                         # (n_freqs, n_mels)


def build_kernel_weights():
    """Returns (wcs[512,512] bf16, fb_pad[256,128] bf16) for the kernel."""
    window = _padded_window(N_FFT, WIN_LENGTH)
    wc, ws = _dft_matrices(N_FFT, N_FREQS, window)
    # Drop the Nyquist column (index 256): the HTK filterbank with f_max=sr/2
    # is exactly zero there, so this is bit-exact for the mel output.
    wcs = np.concatenate([wc[:, :N_FREQS_EFF], ws[:, :N_FREQS_EFF]], axis=1)
    fb = _mel_filterbank(N_FREQS, N_MELS, SAMPLE_RATE)
    fb_pad = np.zeros((N_FREQS_EFF, N_MELS_PAD), dtype=np.float32)
    fb_pad[:, :N_MELS] = fb[:N_FREQS_EFF, :]
    return (jnp.asarray(wcs, dtype=jnp.bfloat16),
            jnp.asarray(fb_pad, dtype=jnp.bfloat16))


# ------------------------------- Pallas kernel -------------------------------

def _logmel_kernel(frames_ref, wcs_ref, fb_ref, out_ref):
    # frames: [TM, 512] bf16, wcs: [512, 512] bf16 (cos|-sin), fb: [256, 128] bf16
    f = frames_ref[...]
    y = jnp.dot(f, wcs_ref[...], preferred_element_type=jnp.float32)  # [TM, 512]
    re = y[:, :N_FREQS_EFF]                    # lane-tile-aligned split (256|256)
    im = y[:, N_FREQS_EFF:]
    power = (re * re + im * im).astype(jnp.bfloat16)                  # power=2.0
    out_ref[...] = jnp.dot(power, fb_ref[...],
                           preferred_element_type=jnp.float32)        # [TM, 128]


def _round_up(x: int, m: int) -> int:
    return (x + m - 1) // m * m


@jax.jit
def mel_spectrogram(x, wcs, fb):
    """x: (B, L) float32 waveform -> (B, n_mels, n_frames) float32."""
    B, L = x.shape
    n_frames = 1 + L // HOP_LENGTH

    # center=True, pad_mode='reflect': pad n_fft//2 on each side.
    xp = jnp.pad(x, ((0, 0), (N_FFT // 2, N_FFT // 2)), mode="reflect")

    # Strided frame extraction (gather) -> (B, n_frames, n_fft) -> (M, n_fft).
    # TODO(synk): framing could be moved inside the kernel (strided rows from a
    # contiguous waveform slab per tile) to cut HBM read traffic ~3.2x.
    idx = (jnp.arange(n_frames)[:, None] * HOP_LENGTH
           + jnp.arange(N_FFT)[None, :])                 # (n_frames, n_fft)
    frames = xp[:, idx]                                  # (B, n_frames, n_fft)
    M = B * n_frames
    frames = frames.reshape(M, N_FFT)

    # Tile the M (frame) axis; pad to a multiple of the tile for clean blocks.
    TM = min(512, _round_up(M, 8))
    M_pad = _round_up(M, TM)
    frames = jnp.pad(frames, ((0, M_pad - M), (0, 0))).astype(jnp.bfloat16)

    flops = 2 * M_pad * N_FFT * (2 * N_FREQS_EFF) + 2 * M_pad * N_FREQS_EFF * N_MELS_PAD
    bytes_accessed = (M_pad * N_FFT * 2                  # frames (bf16)
                      + N_FFT * 2 * N_FREQS_EFF * 2      # wcs (bf16)
                      + N_FREQS_EFF * N_MELS_PAD * 2     # fb (bf16)
                      + M_pad * N_MELS_PAD * 4)          # out (f32)

    out = pl.pallas_call(
        _logmel_kernel,
        out_shape=jax.ShapeDtypeStruct((M_pad, N_MELS_PAD), jnp.float32),
        grid=(M_pad // TM,),
        in_specs=[
            pl.BlockSpec((TM, N_FFT), lambda i: (i, 0)),
            pl.BlockSpec((N_FFT, 2 * N_FREQS_EFF), lambda i: (0, 0)),   # resident
            pl.BlockSpec((N_FREQS_EFF, N_MELS_PAD), lambda i: (0, 0)),  # resident
        ],
        out_specs=pl.BlockSpec((TM, N_MELS_PAD), lambda i: (i, 0)),
        compiler_params=pltpu.CompilerParams(
            dimension_semantics=("parallel",)),
        cost_estimate=pl.CostEstimate(
            flops=flops, transcendentals=0, bytes_accessed=bytes_accessed),
    )(frames, wcs, fb)

    # Strip padding; back to PyTorch layout (B, n_mels, n_frames).
    out = out[:M, :N_MELS]
    return out.reshape(B, n_frames, N_MELS).transpose(0, 2, 1)


# ---------------------------------- driver -----------------------------------

if __name__ == "__main__":
    wcs, fb = build_kernel_weights()

    # Small input: batch=2, 1600 samples (0.1s @ 16kHz) -> 11 frames.
    key = jax.random.PRNGKey(0)
    x = jax.random.normal(key, (2, 1600), dtype=jnp.float32)

    mel = mel_spectrogram(x, wcs, fb)
    mel = jax.block_until_ready(mel)
    n_frames = 1 + 1600 // HOP_LENGTH
    assert mel.shape == (2, N_MELS, n_frames), mel.shape

    # Correctness check against a full-precision (f32, all 257 bins) reference.
    window = _padded_window(N_FFT, WIN_LENGTH)
    wc_np, ws_np = _dft_matrices(N_FFT, N_FREQS, window)
    fb_np = _mel_filterbank(N_FREQS, N_MELS, SAMPLE_RATE)

    xp = jnp.pad(x, ((0, 0), (N_FFT // 2, N_FFT // 2)), mode="reflect")
    idx = (jnp.arange(n_frames)[:, None] * HOP_LENGTH + jnp.arange(N_FFT)[None, :])
    frames = xp[:, idx].reshape(-1, N_FFT)
    re = frames @ jnp.asarray(wc_np)
    im = frames @ jnp.asarray(ws_np)
    ref = ((re * re + im * im) @ jnp.asarray(fb_np))
    ref = ref.reshape(2, n_frames, N_MELS).transpose(0, 2, 1)
    # bf16 operands with f32 accumulation: expect ~1-2% relative error.
    np.testing.assert_allclose(np.asarray(mel), np.asarray(ref),
                               rtol=8e-2, atol=1e-1)

    print("KERNEL_OK")
</pallas_src>

<mosaic_0001>
module attributes {stable_mosaic.version = 11 : i64} {
  func.func @_logmel_kernel(%arg0: i32, %arg1: memref<24x512xbf16, #tpu.memory_space<vmem>>, %arg2: memref<512x512xbf16, #tpu.memory_space<vmem>>, %arg3: memref<256x128xbf16, #tpu.memory_space<vmem>>, %arg4: memref<24x128xf32, #tpu.memory_space<vmem>>) attributes {dimension_semantics = [#tpu.dimension_semantics<parallel>], iteration_bounds = array<i64: 1>, scalar_prefetch = 0 : i64, scratch_operands = 0 : i64, tpu.core_type = #tpu.core_type<tc>, window_params = [{transform_indices = @transform_0, window_bounds = array<i64: 24, 512>}, {pipeline_mode = #tpu.pipeline_mode<synchronous>, transform_indices = @transform_1, window_bounds = array<i64: 512, 512>}, {pipeline_mode = #tpu.pipeline_mode<synchronous>, transform_indices = @transform_2, window_bounds = array<i64: 256, 128>}, {transform_indices = @transform_3, window_bounds = array<i64: 24, 128>}]} {
    %c0 = arith.constant 0 : index
    %c0_0 = arith.constant 0 : index
    %0 = vector.load %arg1[%c0, %c0_0] : memref<24x512xbf16, #tpu.memory_space<vmem>>, vector<24x512xbf16>
    %c0_1 = arith.constant 0 : index
    %c0_2 = arith.constant 0 : index
    %1 = vector.load %arg2[%c0_1, %c0_2] : memref<512x512xbf16, #tpu.memory_space<vmem>>, vector<512x512xbf16>
    %cst = arith.constant dense<0.000000e+00> : vector<24x512xf32>
    %2 = tpu.matmul %0, %1, %cst {dimension_numbers = #tpu.dot_dimension_numbers<[1], [0], [0], [1], [0, 0, 1, 1], [], []>} : vector<24x512xbf16>, vector<512x512xbf16>, vector<24x512xf32> -> vector<24x512xf32>
    %3 = vector.extract_strided_slice %2 {offsets = [0, 0], sizes = [24, 256], strides = [1, 1]} : vector<24x512xf32> to vector<24x256xf32>
    %4 = vector.extract_strided_slice %2 {offsets = [0, 256], sizes = [24, 256], strides = [1, 1]} : vector<24x512xf32> to vector<24x256xf32>
    %5 = arith.mulf %3, %3 : vector<24x256xf32>
    %6 = arith.mulf %4, %4 : vector<24x256xf32>
    %7 = arith.addf %5, %6 : vector<24x256xf32>
    %8 = arith.truncf %7 : vector<24x256xf32> to vector<24x256xbf16>
    %c0_3 = arith.constant 0 : index
    %c0_4 = arith.constant 0 : index
    %9 = vector.load %arg3[%c0_3, %c0_4] : memref<256x128xbf16, #tpu.memory_space<vmem>>, vector<256x128xbf16>
    %cst_5 = arith.constant dense<0.000000e+00> : vector<24x128xf32>
    %10 = tpu.matmul %8, %9, %cst_5 {dimension_numbers = #tpu.dot_dimension_numbers<[1], [0], [0], [1], [0, 0, 1, 1], [], []>} : vector<24x256xbf16>, vector<256x128xbf16>, vector<24x128xf32> -> vector<24x128xf32>
    %c0_6 = arith.constant 0 : index
    %c0_7 = arith.constant 0 : index
    %11 = vector.load %arg4[%c0_6, %c0_7] : memref<24x128xf32, #tpu.memory_space<vmem>>, vector<24x128xf32>
    tpu.vector_store %arg4[%c0_6, %c0_7], %10 {strides = array<i32>} : memref<24x128xf32, #tpu.memory_space<vmem>>, vector<24x128xf32>,
    return
  }
  func.func @transform_0(%arg0: i32) -> (i32, i32) {
    %c0_i32 = arith.constant 0 : i32
    %c0_i32_0 = arith.constant 0 : i32
    return %arg0, %c0_i32 : i32, i32
  }
  func.func @transform_1(%arg0: i32) -> (i32, i32) {
    %c0_i32 = arith.constant 0 : i32
    %c0_i32_0 = arith.constant 0 : i32
    %c0_i32_1 = arith.constant 0 : i32
    return %c0_i32, %c0_i32_0 : i32, i32
  }
  func.func @transform_2(%arg0: i32) -> (i32, i32) {
    %c0_i32 = arith.constant 0 : i32
    %c0_i32_0 = arith.constant 0 : i32
    %c0_i32_1 = arith.constant 0 : i32
    return %c0_i32, %c0_i32_0 : i32, i32
  }
  func.func @transform_3(%arg0: i32) -> (i32, i32) {
    %c0_i32 = arith.constant 0 : i32
    %c0_i32_0 = arith.constant 0 : i32
    return %arg0, %c0_i32 : i32, i32
  }
}

</mosaic_0001>

<llo_original>
// kernel: mel_spectrogram.1
$region0: #{mel_spectrogram.1}
  #allocation0 [shape = 'u32[]', space=smem, size = 0x4, offset = 0x4, fixed_abs, tag = 'smem constant byte address 0x4 - core index']
  #allocation1 [shape = 'u32[144,128]{1,0:T(1,128)}', space=vmem, size = 0x12000, scoped, tag = 'internal scratch']
  %s0 = inlined_call_operand.vmem [shape: bf16[24,512], index: 0, kind: input, shape index: {}]
  %s1 = inlined_call_operand.vmem [shape: bf16[512,512], index: 1, kind: input, shape index: {}]
  %s2 = inlined_call_operand.vmem [shape: bf16[256,128], index: 2, kind: input, shape index: {}]
  %s3 = inlined_call_operand.vmem [shape: f32[24,128], index: 3, kind: output, shape index: {}]
  %s4 = sld [smem:[#allocation0]]
  $region22: #{mel_spectrogram.1} parent=0
    _
  %s6 = ssub.s32 1, %s4
  %s7 = scalar_select 0, %s6, %s4
  // Predicated region
  $region2: #{mel_spectrogram.1} parent=0 // pred_check
    _
  $region3: #{mel_spectrogram.1} parent=0 // pred_check_branch
    %9 = sbr.rel (0) target = $region5
  $region4: #{mel_spectrogram.1} parent=0 // pred_region
    _
  $region5: #{mel_spectrogram.1} parent=0 // pred_fallthru
    _
  // Predicated region
  $region6: #{mel_spectrogram.1} parent=0 // pred_check
    _
  $region7: #{mel_spectrogram.1} parent=0 // pred_check_branch
    %11 = sbr.rel (0) target = $region9
  $region8: #{mel_spectrogram.1} parent=0 // pred_region
    _
  $region9: #{mel_spectrogram.1} parent=0 // pred_fallthru
    _
  // Predicated region
  $region10: #{mel_spectrogram.1} parent=0 // pred_check
    _
  $region11: #{mel_spectrogram.1} parent=0 // pred_check_branch
    %13 = sbr.rel (0) target = $region13
  $region12: #{mel_spectrogram.1} parent=0 // pred_region
    _
  $region13: #{mel_spectrogram.1} parent=0 // pred_fallthru
    _
  %v15 = vld [vmem:[%s0] sm:$0xff]
  %v16 = vld [vmem:[%s0 + $0x8] sm:$0xff]
  %v17 = vld [vmem:[%s0 + $0x10] sm:$0xff]
  %v18 = vld [vmem:[%s0 + $0x18] sm:$0xff]
  %v19 = vld [vmem:[%s0 + $0x20] sm:$0xff]
  %v20 = vld [vmem:[%s0 + $0x28] sm:$0xff]
  %v21 = vld [vmem:[%s1] sm:$0xff]
  %v22 = vld [vmem:[%s1 + $0x8] sm:$0xff]
  %v23 = vld [vmem:[%s1 + $0x10] sm:$0xff]
  %v24 = vld [vmem:[%s1 + $0x18] sm:$0xff]
  %v25 = vld [vmem:[%s1 + $0x20] sm:$0xff]
  %v26 = vld [vmem:[%s1 + $0x28] sm:$0xff]
  %v27 = vld [vmem:[%s1 + $0x30] sm:$0xff]
  %v28 = vld [vmem:[%s1 + $0x38] sm:$0xff]
  %v29 = vld [vmem:[%s1 + $0x40] sm:$0xff]
  %v30 = vld [vmem:[%s1 + $0x48] sm:$0xff]
  %v31 = vld [vmem:[%s1 + $0x50] sm:$0xff]
  %v32 = vld [vmem:[%s1 + $0x58] sm:$0xff]
  %v33 = vld [vmem:[%s1 + $0x60] sm:$0xff]
  %v34 = vld [vmem:[%s1 + $0x68] sm:$0xff]
  %v35 = vld [vmem:[%s1 + $0x70] sm:$0xff]
  %v36 = vld [vmem:[%s1 + $0x78] sm:$0xff]
  %v37 = vld [vmem:[%s1 + $0x80] sm:$0xff]
  %v38 = vld [vmem:[%s1 + $0x88] sm:$0xff]
  %v39 = vld [vmem:[%s1 + $0x90] sm:$0xff]
  %v40 = vld [vmem:[%s1 + $0x98] sm:$0xff]
  %v41 = vld [vmem:[%s1 + $0xa0] sm:$0xff]
  %v42 = vld [vmem:[%s1 + $0xa8] sm:$0xff]
  %v43 = vld [vmem:[%s1 + $0xb0] sm:$0xff]
  %v44 = vld [vmem:[%s1 + $0xb8] sm:$0xff]
  %v45 = vld [vmem:[%s1 + $0xc0] sm:$0xff]
  %v46 = vld [vmem:[%s1 + $0xc8] sm:$0xff]
  %v47 = vld [vmem:[%s1 + $0xd0] sm:$0xff]
  %v48 = vld [vmem:[%s1 + $0xd8] sm:$0xff]
  %v49 = vld [vmem:[%s1 + $0xe0] sm:$0xff]
  %v50 = vld [vmem:[%s1 + $0xe8] sm:$0xff]
  %v51 = vld [vmem:[%s1 + $0xf0] sm:$0xff]
  %v52 = vld [vmem:[%s1 + $0xf8] sm:$0xff]
  %v53 = vld [vmem:[%s1 + $0x100] sm:$0xff]
  %v54 = vld [vmem:[%s1 + $0x108] sm:$0xff]
  %v55 = vld [vmem:[%s1 + $0x110] sm:$0xff]
  %v56 = vld [vmem:[%s1 + $0x118] sm:$0xff]
  %v57 = vld [vmem:[%s1 + $0x120] sm:$0xff]
  %v58 = vld [vmem:[%s1 + $0x128] sm:$0xff]
  %v59 = vld [vmem:[%s1 + $0x130] sm:$0xff]
  %v60 = vld [vmem:[%s1 + $0x138] sm:$0xff]
  %v61 = vld [vmem:[%s1 + $0x140] sm:$0xff]
  %v62 = vld [vmem:[%s1 + $0x148] sm:$0xff]
  %v63 = vld [vmem:[%s1 + $0x150] sm:$0xff]
  %v64 = vld [vmem:[%s1 + $0x158] sm:$0xff]
  %v65 = vld [vmem:[%s1 + $0x160] sm:$0xff]
  %v66 = vld [vmem:[%s1 + $0x168] sm:$0xff]
  %v67 = vld [vmem:[%s1 + $0x170] sm:$0xff]
  %v68 = vld [vmem:[%s1 + $0x178] sm:$0xff]
  %v69 = vld [vmem:[%s1 + $0x180] sm:$0xff]
  %v70 = vld [vmem:[%s1 + $0x188] sm:$0xff]
  %v71 = vld [vmem:[%s1 + $0x190] sm:$0xff]
  %v72 = vld [vmem:[%s1 + $0x198] sm:$0xff]
  %v73 = vld [vmem:[%s1 + $0x1a0] sm:$0xff]
  %v74 = vld [vmem:[%s1 + $0x1a8] sm:$0xff]
  %v75 = vld [vmem:[%s1 + $0x1b0] sm:$0xff]
  %v76 = vld [vmem:[%s1 + $0x1b8] sm:$0xff]
  %v77 = vld [vmem:[%s1 + $0x1c0] sm:$0xff]
  %v78 = vld [vmem:[%s1 + $0x1c8] sm:$0xff]
  %v79 = vld [vmem:[%s1 + $0x1d0] sm:$0xff]
  %v80 = vld [vmem:[%s1 + $0x1d8] sm:$0xff]
  %v81 = vld [vmem:[%s1 + $0x1e0] sm:$0xff]
  %v82 = vld [vmem:[%s1 + $0x1e8] sm:$0xff]
  %v83 = vld [vmem:[%s1 + $0x1f0] sm:$0xff]
  %v84 = vld [vmem:[%s1 + $0x1f8] sm:$0xff]
  %v85 = vld [vmem:[%s1 + $0x200] sm:$0xff]
  %v86 = vld [vmem:[%s1 + $0x208] sm:$0xff]
  %v87 = vld [vmem:[%s1 + $0x210] sm:$0xff]
  %v88 = vld [vmem:[%s1 + $0x218] sm:$0xff]
  %v89 = vld [vmem:[%s1 + $0x220] sm:$0xff]
  %v90 = vld [vmem:[%s1 + $0x228] sm:$0xff]
  %v91 = vld [vmem:[%s1 + $0x230] sm:$0xff]
  %v92 = vld [vmem:[%s1 + $0x238] sm:$0xff]
  %v93 = vld [vmem:[%s1 + $0x240] sm:$0xff]
  %v94 = vld [vmem:[%s1 + $0x248] sm:$0xff]
  %v95 = vld [vmem:[%s1 + $0x250] sm:$0xff]
  %v96 = vld [vmem:[%s1 + $0x258] sm:$0xff]
  %v97 = vld [vmem:[%s1 + $0x260] sm:$0xff]
  %v98 = vld [vmem:[%s1 + $0x268] sm:$0xff]
  %v99 = vld [vmem:[%s1 + $0x270] sm:$0xff]
  %v100 = vld [vmem:[%s1 + $0x278] sm:$0xff]
  %v101 = vld [vmem:[%s1 + $0x280] sm:$0xff]
  %v102 = vld [vmem:[%s1 + $0x288] sm:$0xff]
  %v103 = vld [vmem:[%s1 + $0x290] sm:$0xff]
  %v104 = vld [vmem:[%s1 + $0x298] sm:$0xff]
  %v105 = vld [vmem:[%s1 + $0x2a0] sm:$0xff]
  %v106 = vld [vmem:[%s1 + $0x2a8] sm:$0xff]
  %v107 = vld [vmem:[%s1 + $0x2b0] sm:$0xff]
  %v108 = vld [vmem:[%s1 + $0x2b8] sm:$0xff]
  %v109 = vld [vmem:[%s1 + $0x2c0] sm:$0xff]
  %v110 = vld [vmem:[%s1 + $0x2c8] sm:$0xff]
  %v111 = vld [vmem:[%s1 + $0x2d0] sm:$0xff]
  %v112 = vld [vmem:[%s1 + $0x2d8] sm:$0xff]
  %v113 = vld [vmem:[%s1 + $0x2e0] sm:$0xff]
  %v114 = vld [vmem:[%s1 + $0x2e8] sm:$0xff]
  %v115 = vld [vmem:[%s1 + $0x2f0] sm:$0xff]
  %v116 = vld [vmem:[%s1 + $0x2f8] sm:$0xff]
  %v117 = vld [vmem:[%s1 + $0x300] sm:$0xff]
  %v118 = vld [vmem:[%s1 + $0x308] sm:$0xff]
  %v119 = vld [vmem:[%s1 + $0x310] sm:$0xff]
  %v120 = vld [vmem:[%s1 + $0x318] sm:$0xff]
  %v121 = vld [vmem:[%s1 + $0x320] sm:$0xff]
  %v122 = vld [vmem:[%s1 + $0x328] sm:$0xff]
  %v123 = vld [vmem:[%s1 + $0x330] sm:$0xff]
  %v124 = vld [vmem:[%s1 + $0x338] sm:$0xff]
  %v125 = vld [vmem:[%s1 + $0x340] sm:$0xff]
  %v126 = vld [vmem:[%s1 + $0x348] sm:$0xff]
  %v127 = vld [vmem:[%s1 + $0x350] sm:$0xff]
  %v128 = vld [vmem:[%s1 + $0x358] sm:$0xff]
  %v129 = vld [vmem:[%s1 + $0x360] sm:$0xff]
  %v130 = vld [vmem:[%s1 + $0x368] sm:$0xff]
  %v131 = vld [vmem:[%s1 + $0x370] sm:$0xff]
  %v132 = vld [vmem:[%s1 + $0x378] sm:$0xff]
  %v133 = vld [vmem:[%s1 + $0x380] sm:$0xff]
  %v134 = vld [vmem:[%s1 + $0x388] sm:$0xff]
  %v135 = vld [vmem:[%s1 + $0x390] sm:$0xff]
  %v136 = vld [vmem:[%s1 + $0x398] sm:$0xff]
  %v137 = vld [vmem:[%s1 + $0x3a0] sm:$0xff]
  %v138 = vld [vmem:[%s1 + $0x3a8] sm:$0xff]
  %v139 = vld [vmem:[%s1 + $0x3b0] sm:$0xff]
  %v140 = vld [vmem:[%s1 + $0x3b8] sm:$0xff]
  %v141 = vld [vmem:[%s1 + $0x3c0] sm:$0xff]
  %v142 = vld [vmem:[%s1 + $0x3c8] sm:$0xff]
  %v143 = vld [vmem:[%s1 + $0x3d0] sm:$0xff]
  %v144 = vld [vmem:[%s1 + $0x3d8] sm:$0xff]
  %v145 = vld [vmem:[%s1 + $0x3e0] sm:$0xff]
  %v146 = vld [vmem:[%s1 + $0x3e8] sm:$0xff]
  %v147 = vld [vmem:[%s1 + $0x3f0] sm:$0xff]
  %v148 = vld [vmem:[%s1 + $0x3f8] sm:$0xff]
  %v155 = vunpack.c.l.b16 %v15
  %v156 = vunpack.c.h.b16 %v15
  %v157 = vunpack.c.l.b16 %v16
  %v158 = vunpack.c.h.b16 %v16
  %v159 = vunpack.c.l.b16 %v17
  %v160 = vunpack.c.h.b16 %v17
  %v161 = vunpack.c.l.b16 %v18
  %v162 = vunpack.c.h.b16 %v18
  %v163 = vunpack.c.l.b16 %v19
  %v164 = vunpack.c.h.b16 %v19
  %v165 = vunpack.c.l.b16 %v20
  %v166 = vunpack.c.h.b16 %v20
  %v167 = vpack.c.b16 %v159, %v155
  %v168 = vpack.c.b16 %v160, %v156
  %v169 = vpack.c.b16 %v161, %v157
  %v170 = vpack.c.b16 %v162, %v158
  %v171 = vpack.c.b16 %v163, %v163
  %v172 = vpack.c.b16 %v164, %v164
  %v173 = vpack.c.b16 %v165, %v165
  %v174 = vpack.c.b16 %v166, %v166
  %v311 = vunpack.c.l.b16 %v21
  %v312 = vunpack.c.h.b16 %v21
  %v313 = vunpack.c.l.b16 %v22
  %v314 = vunpack.c.h.b16 %v22
  %v315 = vunpack.c.l.b16 %v23
  %v316 = vunpack.c.h.b16 %v23
  %v317 = vunpack.c.l.b16 %v24
  %v318 = vunpack.c.h.b16 %v24
  %v319 = vunpack.c.l.b16 %v25
  %v320 = vunpack.c.h.b16 %v25
  %v321 = vunpack.c.l.b16 %v26
  %v322 = vunpack.c.h.b16 %v26
  %v323 = vunpack.c.l.b16 %v27
  %v324 = vunpack.c.h.b16 %v27
  %v325 = vunpack.c.l.b16 %v28
  %v326 = vunpack.c.h.b16 %v28
  %v327 = vunpack.c.l.b16 %v29
  %v328 = vunpack.c.h.b16 %v29
  %v329 = vunpack.c.l.b16 %v30
  %v330 = vunpack.c.h.b16 %v30
  %v331 = vunpack.c.l.b16 %v31
  %v332 = vunpack.c.h.b16 %v31
  %v333 = vunpack.c.l.b16 %v32
  %v334 = vunpack.c.h.b16 %v32
  %v335 = vunpack.c.l.b16 %v33
  %v336 = vunpack.c.h.b16 %v33
  %v337 = vunpack.c.l.b16 %v34
  %v338 = vunpack.c.h.b16 %v34
  %v339 = vunpack.c.l.b16 %v35
  %v340 = vunpack.c.h.b16 %v35
  %v341 = vunpack.c.l.b16 %v36
  %v342 = vunpack.c.h.b16 %v36
  %v343 = vunpack.c.l.b16 %v37
  %v344 = vunpack.c.h.b16 %v37
  %v345 = vunpack.c.l.b16 %v38
  %v346 = vunpack.c.h.b16 %v38
  %v347 = vunpack.c.l.b16 %v39
  %v348 = vunpack.c.h.b16 %v39
  %v349 = vunpack.c.l.b16 %v40
  %v350 = vunpack.c.h.b16 %v40
  %v351 = vunpack.c.l.b16 %v41
  %v352 = vunpack.c.h.b16 %v41
  %v353 = vunpack.c.l.b16 %v42
  %v354 = vunpack.c.h.b16 %v42
  %v355 = vunpack.c.l.b16 %v43
  %v356 = vunpack.c.h.b16 %v43
  %v357 = vunpack.c.l.b16 %v44
  %v358 = vunpack.c.h.b16 %v44
  %v359 = vunpack.c.l.b16 %v45
  %v360 = vunpack.c.h.b16 %v45
  %v361 = vunpack.c.l.b16 %v46
  %v362 = vunpack.c.h.b16 %v46
  %v363 = vunpack.c.l.b16 %v47
  %v364 = vunpack.c.h.b16 %v47
  %v365 = vunpack.c.l.b16 %v48
  %v366 = vunpack.c.h.b16 %v48
  %v367 = vunpack.c.l.b16 %v49
  %v368 = vunpack.c.h.b16 %v49
  %v369 = vunpack.c.l.b16 %v50
  %v370 = vunpack.c.h.b16 %v50
  %v371 = vunpack.c.l.b16 %v51
  %v372 = vunpack.c.h.b16 %v51
  %v373 = vunpack.c.l.b16 %v52
  %v374 = vunpack.c.h.b16 %v52
  %v375 = vunpack.c.l.b16 %v53
  %v376 = vunpack.c.h.b16 %v53
  %v377 = vunpack.c.l.b16 %v54
  %v378 = vunpack.c.h.b16 %v54
  %v379 = vunpack.c.l.b16 %v55
  %v380 = vunpack.c.h.b16 %v55
  %v381 = vunpack.c.l.b16 %v56
  %v382 = vunpack.c.h.b16 %v56
  %v383 = vunpack.c.l.b16 %v57
  %v384 = vunpack.c.h.b16 %v57
  %v385 = vunpack.c.l.b16 %v58
  %v386 = vunpack.c.h.b16 %v58
  %v387 = vunpack.c.l.b16 %v59
  %v388 = vunpack.c.h.b16 %v59
  %v389 = vunpack.c.l.b16 %v60
  %v390 = vunpack.c.h.b16 %v60
  %v391 = vunpack.c.l.b16 %v61
  %v392 = vunpack.c.h.b16 %v61
  %v393 = vunpack.c.l.b16 %v62
  %v394 = vunpack.c.h.b16 %v62
  %v395 = vunpack.c.l.b16 %v63
  %v396 = vunpack.c.h.b16 %v63
  %v397 = vunpack.c.l.b16 %v64
  %v398 = vunpack.c.h.b16 %v64
  %v399 = vunpack.c.l.b16 %v65
  %v400 = vunpack.c.h.b16 %v65
  %v401 = vunpack.c.l.b16 %v66
  %v402 = vunpack.c.h.b16 %v66
  %v403 = vunpack.c.l.b16 %v67
  %v404 = vunpack.c.h.b16 %v67
  %v405 = vunpack.c.l.b16 %v68
  %v406 = vunpack.c.h.b16 %v68
  %v407 = vunpack.c.l.b16 %v69
  %v408 = vunpack.c.h.b16 %v69
  %v409 = vunpack.c.l.b16 %v70
  %v410 = vunpack.c.h.b16 %v70
  %v411 = vunpack.c.l.b16 %v71
  %v412 = vunpack.c.h.b16 %v71
  %v413 = vunpack.c.l.b16 %v72
  %v414 = vunpack.c.h.b16 %v72
  %v415 = vunpack.c.l.b16 %v73
  %v416 = vunpack.c.h.b16 %v73
  %v417 = vunpack.c.l.b16 %v74
  %v418 = vunpack.c.h.b16 %v74
  %v419 = vunpack.c.l.b16 %v75
  %v420 = vunpack.c.h.b16 %v75
  %v421 = vunpack.c.l.b16 %v76
  %v422 = vunpack.c.h.b16 %v76
  %v423 = vunpack.c.l.b16 %v77
  %v424 = vunpack.c.h.b16 %v77
  %v425 = vunpack.c.l.b16 %v78
  %v426 = vunpack.c.h.b16 %v78
  %v427 = vunpack.c.l.b16 %v79
  %v428 = vunpack.c.h.b16 %v79
  %v429 = vunpack.c.l.b16 %v80
  %v430 = vunpack.c.h.b16 %v80
  %v431 = vunpack.c.l.b16 %v81
  %v432 = vunpack.c.h.b16 %v81
  %v433 = vunpack.c.l.b16 %v82
  %v434 = vunpack.c.h.b16 %v82
  %v435 = vunpack.c.l.b16 %v83
  %v436 = vunpack.c.h.b16 %v83
  %v437 = vunpack.c.l.b16 %v84
  %v438 = vunpack.c.h.b16 %v84
  %v439 = vunpack.c.l.b16 %v85
  %v440 = vunpack.c.h.b16 %v85
  %v441 = vunpack.c.l.b16 %v86
  %v442 = vunpack.c.h.b16 %v86
  %v443 = vunpack.c.l.b16 %v87
  %v444 = vunpack.c.h.b16 %v87
  %v445 = vunpack.c.l.b16 %v88
  %v446 = vunpack.c.h.b16 %v88
  %v447 = vunpack.c.l.b16 %v89
  %v448 = vunpack.c.h.b16 %v89
  %v449 = vunpack.c.l.b16 %v90
  %v450 = vunpack.c.h.b16 %v90
  %v451 = vunpack.c.l.b16 %v91
  %v452 = vunpack.c.h.b16 %v91
  %v453 = vunpack.c.l.b16 %v92
  %v454 = vunpack.c.h.b16 %v92
  %v455 = vunpack.c.l.b16 %v93
  %v456 = vunpack.c.h.b16 %v93
  %v457 = vunpack.c.l.b16 %v94
  %v458 = vunpack.c.h.b16 %v94
  %v459 = vunpack.c.l.b16 %v95
  %v460 = vunpack.c.h.b16 %v95
  %v461 = vunpack.c.l.b16 %v96
  %v462 = vunpack.c.h.b16 %v96
  %v463 = vunpack.c.l.b16 %v97
  %v464 = vunpack.c.h.b16 %v97
  %v465 = vunpack.c.l.b16 %v98
  %v466 = vunpack.c.h.b16 %v98
  %v467 = vunpack.c.l.b16 %v99
  %v468 = vunpack.c.h.b16 %v99
  %v469 = vunpack.c.l.b16 %v100
  %v470 = vunpack.c.h.b16 %v100
  %v471 = vunpack.c.l.b16 %v101
  %v472 = vunpack.c.h.b16 %v101
  %v473 = vunpack.c.l.b16 %v102
  %v474 = vunpack.c.h.b16 %v102
  %v475 = vunpack.c.l.b16 %v103
  %v476 = vunpack.c.h.b16 %v103
  %v477 = vunpack.c.l.b16 %v104
  %v478 = vunpack.c.h.b16 %v104
  %v479 = vunpack.c.l.b16 %v105
  %v480 = vunpack.c.h.b16 %v105
  %v481 = vunpack.c.l.b16 %v106
  %v482 = vunpack.c.h.b16 %v106
  %v483 = vunpack.c.l.b16 %v107
  %v484 = vunpack.c.h.b16 %v107
  %v485 = vunpack.c.l.b16 %v108
  %v486 = vunpack.c.h.b16 %v108
  %v487 = vunpack.c.l.b16 %v109
  %v488 = vunpack.c.h.b16 %v109
  %v489 = vunpack.c.l.b16 %v110
  %v490 = vunpack.c.h.b16 %v110
  %v491 = vunpack.c.l.b16 %v111
  %v492 = vunpack.c.h.b16 %v111
  %v493 = vunpack.c.l.b16 %v112
  %v494 = vunpack.c.h.b16 %v112
  %v495 = vunpack.c.l.b16 %v113
  %v496 = vunpack.c.h.b16 %v113
  %v497 = vunpack.c.l.b16 %v114
  %v498 = vunpack.c.h.b16 %v114
  %v499 = vunpack.c.l.b16 %v115
  %v500 = vunpack.c.h.b16 %v115
  %v501 = vunpack.c.l.b16 %v116
  %v502 = vunpack.c.h.b16 %v116
  %v503 = vunpack.c.l.b16 %v117
  %v504 = vunpack.c.h.b16 %v117
  %v505 = vunpack.c.l.b16 %v118
  %v506 = vunpack.c.h.b16 %v118
  %v507 = vunpack.c.l.b16 %v119
  %v508 = vunpack.c.h.b16 %v119
  %v509 = vunpack.c.l.b16 %v120
  %v510 = vunpack.c.h.b16 %v120
  %v511 = vunpack.c.l.b16 %v121
  %v512 = vunpack.c.h.b16 %v121
  %v513 = vunpack.c.l.b16 %v122
  %v514 = vunpack.c.h.b16 %v122
  %v515 = vunpack.c.l.b16 %v123
  %v516 = vunpack.c.h.b16 %v123
  %v517 = vunpack.c.l.b16 %v124
  %v518 = vunpack.c.h.b16 %v124
  %v519 = vunpack.c.l.b16 %v125
  %v520 = vunpack.c.h.b16 %v125
  %v521 = vunpack.c.l.b16 %v126
  %v522 = vunpack.c.h.b16 %v126
  %v523 = vunpack.c.l.b16 %v127
  %v524 = vunpack.c.h.b16 %v127
  %v525 = vunpack.c.l.b16 %v128
  %v526 = vunpack.c.h.b16 %v128
  %v527 = vunpack.c.l.b16 %v129
  %v528 = vunpack.c.h.b16 %v129
  %v529 = vunpack.c.l.b16 %v130
  %v530 = vunpack.c.h.b16 %v130
  %v531 = vunpack.c.l.b16 %v131
  %v532 = vunpack.c.h.b16 %v131
  %v533 = vunpack.c.l.b16 %v132
  %v534 = vunpack.c.h.b16 %v132
  %v535 = vunpack.c.l.b16 %v133
  %v536 = vunpack.c.h.b16 %v133
  %v537 = vunpack.c.l.b16 %v134
  %v538 = vunpack.c.h.b16 %v134
  %v539 = vunpack.c.l.b16 %v135
  %v540 = vunpack.c.h.b16 %v135
  %v541 = vunpack.c.l.b16 %v136
  %v542 = vunpack.c.h.b16 %v136
  %v543 = vunpack.c.l.b16 %v137
  %v544 = vunpack.c.h.b16 %v137
  %v545 = vunpack.c.l.b16 %v138
  %v546 = vunpack.c.h.b16 %v138
  %v547 = vunpack.c.l.b16 %v139
  %v548 = vunpack.c.h.b16 %v139
  %v549 = vunpack.c.l.b16 %v140
  %v550 = vunpack.c.h.b16 %v140
  %v551 = vunpack.c.l.b16 %v141
  %v552 = vunpack.c.h.b16 %v141
  %v553 = vunpack.c.l.b16 %v142
  %v554 = vunpack.c.h.b16 %v142
  %v555 = vunpack.c.l.b16 %v143
  %v556 = vunpack.c.h.b16 %v143
  %v557 = vunpack.c.l.b16 %v144
  %v558 = vunpack.c.h.b16 %v144
  %v559 = vunpack.c.l.b16 %v145
  %v560 = vunpack.c.h.b16 %v145
  %v561 = vunpack.c.l.b16 %v146
  %v562 = vunpack.c.h.b16 %v146
  %v563 = vunpack.c.l.b16 %v147
  %v564 = vunpack.c.h.b16 %v147
  %v565 = vunpack.c.l.b16 %v148
  %v566 = vunpack.c.h.b16 %v148
  %v567 = vpack.c.b16 %v315, %v311
  %v568 = vpack.c.b16 %v316, %v312
  %v569 = vpack.c.b16 %v317, %v313
  %v570 = vpack.c.b16 %v318, %v314
  %v571 = vpack.c.b16 %v323, %v319
  %v572 = vpack.c.b16 %v324, %v320
  %v573 = vpack.c.b16 %v325, %v321
  %v574 = vpack.c.b16 %v326, %v322
  %v575 = vpack.c.b16 %v331, %v327
  %v576 = vpack.c.b16 %v332, %v328
  %v577 = vpack.c.b16 %v333, %v329
  %v578 = vpack.c.b16 %v334, %v330
  %v579 = vpack.c.b16 %v339, %v335
  %v580 = vpack.c.b16 %v340, %v336
  %v581 = vpack.c.b16 %v341, %v337
  %v582 = vpack.c.b16 %v342, %v338
  %v583 = vpack.c.b16 %v347, %v343
  %v584 = vpack.c.b16 %v348, %v344
  %v585 = vpack.c.b16 %v349, %v345
  %v586 = vpack.c.b16 %v350, %v346
  %v587 = vpack.c.b16 %v355, %v351
  %v588 = vpack.c.b16 %v356, %v352
  %v589 = vpack.c.b16 %v357, %v353
  %v590 = vpack.c.b16 %v358, %v354
  %v591 = vpack.c.b16 %v363, %v359
  %v592 = vpack.c.b16 %v364, %v360
  %v593 = vpack.c.b16 %v365, %v361
  %v594 = vpack.c.b16 %v366, %v362
  %v595 = vpack.c.b16 %v371, %v367
  %v596 = vpack.c.b16 %v372, %v368
  %v597 = vpack.c.b16 %v373, %v369
  %v598 = vpack.c.b16 %v374, %v370
  %v599 = vpack.c.b16 %v379, %v375
  %v600 = vpack.c.b16 %v380, %v376
  %v601 = vpack.c.b16 %v381, %v377
  %v602 = vpack.c.b16 %v382, %v378
  %v603 = vpack.c.b16 %v387, %v383
  %v604 = vpack.c.b16 %v388, %v384
  %v605 = vpack.c.b16 %v389, %v385
  %v606 = vpack.c.b16 %v390, %v386
  %v607 = vpack.c.b16 %v395, %v391
  %v608 = vpack.c.b16 %v396, %v392
  %v609 = vpack.c.b16 %v397, %v393
  %v610 = vpack.c.b16 %v398, %v394
  %v611 = vpack.c.b16 %v403, %v399
  %v612 = vpack.c.b16 %v404, %v400
  %v613 = vpack.c.b16 %v405, %v401
  %v614 = vpack.c.b16 %v406, %v402
  %v615 = vpack.c.b16 %v411, %v407
  %v616 = vpack.c.b16 %v412, %v408
  %v617 = vpack.c.b16 %v413, %v409
  %v618 = vpack.c.b16 %v414, %v410
  %v619 = vpack.c.b16 %v419, %v415
  %v620 = vpack.c.b16 %v420, %v416
  %v621 = vpack.c.b16 %v421, %v417
  %v622 = vpack.c.b16 %v422, %v418
  %v623 = vpack.c.b16 %v427, %v423
  %v624 = vpack.c.b16 %v428, %v424
  %v625 = vpack.c.b16 %v429, %v425
  %v626 = vpack.c.b16 %v430, %v426
  %v627 = vpack.c.b16 %v435, %v431
  %v628 = vpack.c.b16 %v436, %v432
  %v629 = vpack.c.b16 %v437, %v433
  %v630 = vpack.c.b16 %v438, %v434
  %v631 = vpack.c.b16 %v443, %v439
  %v632 = vpack.c.b16 %v444, %v440
  %v633 = vpack.c.b16 %v445, %v441
  %v634 = vpack.c.b16 %v446, %v442
  %v635 = vpack.c.b16 %v451, %v447
  %v636 = vpack.c.b16 %v452, %v448
  %v637 = vpack.c.b16 %v453, %v449
  %v638 = vpack.c.b16 %v454, %v450
  %v639 = vpack.c.b16 %v459, %v455
  %v640 = vpack.c.b16 %v460, %v456
  %v641 = vpack.c.b16 %v461, %v457
  %v642 = vpack.c.b16 %v462, %v458
  %v643 = vpack.c.b16 %v467, %v463
  %v644 = vpack.c.b16 %v468, %v464
  %v645 = vpack.c.b16 %v469, %v465
  %v646 = vpack.c.b16 %v470, %v466
  %v647 = vpack.c.b16 %v475, %v471
  %v648 = vpack.c.b16 %v476, %v472
  %v649 = vpack.c.b16 %v477, %v473
  %v650 = vpack.c.b16 %v478, %v474
  %v651 = vpack.c.b16 %v483, %v479
  %v652 = vpack.c.b16 %v484, %v480
  %v653 = vpack.c.b16 %v485, %v481
  %v654 = vpack.c.b16 %v486, %v482
  %v655 = vpack.c.b16 %v491, %v487
  %v656 = vpack.c.b16 %v492, %v488
  %v657 = vpack.c.b16 %v493, %v489
  %v658 = vpack.c.b16 %v494, %v490
  %v659 = vpack.c.b16 %v499, %v495
  %v660 = vpack.c.b16 %v500, %v496
  %v661 = vpack.c.b16 %v501, %v497
  %v662 = vpack.c.b16 %v502, %v498
  %v663 = vpack.c.b16 %v507, %v503
  %v664 = vpack.c.b16 %v508, %v504
  %v665 = vpack.c.b16 %v509, %v505
  %v666 = vpack.c.b16 %v510, %v506
  %v667 = vpack.c.b16 %v515, %v511
  %v668 = vpack.c.b16 %v516, %v512
  %v669 = vpack.c.b16 %v517, %v513
  %v670 = vpack.c.b16 %v518, %v514
  %v671 = vpack.c.b16 %v523, %v519
  %v672 = vpack.c.b16 %v524, %v520
  %v673 = vpack.c.b16 %v525, %v521
  %v674 = vpack.c.b16 %v526, %v522
  %v675 = vpack.c.b16 %v531, %v527
  %v676 = vpack.c.b16 %v532, %v528
  %v677 = vpack.c.b16 %v533, %v529
  %v678 = vpack.c.b16 %v534, %v530
  %v679 = vpack.c.b16 %v539, %v535
  %v680 = vpack.c.b16 %v540, %v536
  %v681 = vpack.c.b16 %v541, %v537
  %v682 = vpack.c.b16 %v542, %v538
  %v683 = vpack.c.b16 %v547, %v543
  %v684 = vpack.c.b16 %v548, %v544
  %v685 = vpack.c.b16 %v549, %v545
  %v686 = vpack.c.b16 %v550, %v546
  %v687 = vpack.c.b16 %v555, %v551
  %v688 = vpack.c.b16 %v556, %v552
  %v689 = vpack.c.b16 %v557, %v553
  %v690 = vpack.c.b16 %v558, %v554
  %v691 = vpack.c.b16 %v563, %v559
  %v692 = vpack.c.b16 %v564, %v560
  %v693 = vpack.c.b16 %v565, %v561
  %v694 = vpack.c.b16 %v566, %v562
  %823 = vmatprep.subr.bf16.mxu0 %v568
  %824 = vmatpush1.bf16.msra.mxu0 %v567
  %825 = vmatprep.subr.bf16.mxu0 %v572
  %826 = vmatpush1.bf16.msra.mxu0 %v571
  %827 = vmatprep.subr.bf16.mxu0 %v576
  %828 = vmatpush1.bf16.msra.mxu0 %v575
  %829 = vmatprep.subr.bf16.mxu0 %v580
  %830 = vmatpush1.bf16.msra.mxu0 %v579
  %831 = vmatprep.subr.bf16.mxu0 %v584
  %832 = vmatpush1.bf16.msra.mxu0 %v583
  %833 = vmatprep.subr.bf16.mxu0 %v588
  %834 = vmatpush1.bf16.msra.mxu0 %v587
  %835 = vmatprep.subr.bf16.mxu0 %v592
  %836 = vmatpush1.bf16.msra.mxu0 %v591
  %837 = vmatprep.subr.bf16.mxu0 %v596
  %838 = vmatpush1.bf16.msra.mxu0 %v595
  %839 = vmatprep.subr.bf16.mxu0 %v600
  %840 = vmatpush1.bf16.msra.mxu0 %v599
  %841 = vmatprep.subr.bf16.mxu0 %v604
  %842 = vmatpush1.bf16.msra.mxu0 %v603
  %843 = vmatprep.subr.bf16.mxu0 %v608
  %844 = vmatpush1.bf16.msra.mxu0 %v607
  %845 = vmatprep.subr.bf16.mxu0 %v612
  %846 = vmatpush1.bf16.msra.mxu0 %v611
  %847 = vmatprep.subr.bf16.mxu0 %v616
  %848 = vmatpush1.bf16.msra.mxu0 %v615
  %849 = vmatprep.subr.bf16.mxu0 %v620
  %850 = vmatpush1.bf16.msra.mxu0 %v619
  %851 = vmatprep.subr.bf16.mxu0 %v624
  %852 = vmatpush1.bf16.msra.mxu0 %v623
  %853 = vmatprep.subr.bf16.mxu0 %v628
  %854 = vmatpush1.bf16.msra.mxu0 %v627
  %855 = vmatprep.mubr.bf16.mxu0 %v168
  %856 = vmatmul.mubr.bf16.gmra.mrb[0].mxu0 %v167
  %v857 = vpop.f32.mrb[0].mxu0
  %v858 = vadd.f32 0.0, %v857
  %v859 = vpop.f32.mrb[0].mxu0
  %v860 = vadd.f32 0.0, %v859
  %v861 = vpop.f32.mrb[0].mxu0
  %v862 = vadd.f32 0.0, %v861
  %v863 = vpop.f32.mrb[0].mxu0
  %v864 = vadd.f32 0.0, %v863
  %865 = vmatprep.mubr.bf16.mxu0 %v172
  %866 = vmatmul.mubr.bf16.gmra.mrb[0].mxu0 %v171
  %v867 = vpop.f32.mrb[0].mxu0
  %v868 = vadd.f32 0.0, %v867
  %v869 = vpop.f32.mrb[0].mxu0
  %v870 = vadd.f32 0.0, %v869
  %v871 = vpop.f32.mrb[0].mxu0
  %v872 = vpop.f32.mrb[0].mxu0
  %873 = vdwg.mxu0
  %874 = vmatprep.subr.bf16.mxu0 %v632
  %875 = vmatpush1.bf16.msra.mxu0 %v631
  %876 = vmatprep.subr.bf16.mxu0 %v636
  %877 = vmatpush1.bf16.msra.mxu0 %v635
  %878 = vmatprep.subr.bf16.mxu0 %v640
  %879 = vmatpush1.bf16.msra.mxu0 %v639
  %880 = vmatprep.subr.bf16.mxu0 %v644
  %881 = vmatpush1.bf16.msra.mxu0 %v643
  %882 = vmatprep.subr.bf16.mxu0 %v648
  %883 = vmatpush1.bf16.msra.mxu0 %v647
  %884 = vmatprep.subr.bf16.mxu0 %v652
  %885 = vmatpush1.bf16.msra.mxu0 %v651
  %886 = vmatprep.subr.bf16.mxu0 %v656
  %887 = vmatpush1.bf16.msra.mxu0 %v655
  %888 = vmatprep.subr.bf16.mxu0 %v660
  %889 = vmatpush1.bf16.msra.mxu0 %v659
  %890 = vmatprep.subr.bf16.mxu0 %v664
  %891 = vmatpush1.bf16.msra.mxu0 %v663
  %892 = vmatprep.subr.bf16.mxu0 %v668
  %893 = vmatpush1.bf16.msra.mxu0 %v667
  %894 = vmatprep.subr.bf16.mxu0 %v672
  %895 = vmatpush1.bf16.msra.mxu0 %v671
  %896 = vmatprep.subr.bf16.mxu0 %v676
  %897 = vmatpush1.bf16.msra.mxu0 %v675
  %898 = vmatprep.subr.bf16.mxu0 %v680
  %899 = vmatpush1.bf16.msra.mxu0 %v679
  %900 = vmatprep.subr.bf16.mxu0 %v684
  %901 = vmatpush1.bf16.msra.mxu0 %v683
  %902 = vmatprep.subr.bf16.mxu0 %v688
  %903 = vmatpush1.bf16.msra.mxu0 %v687
  %904 = vmatprep.subr.bf16.mxu0 %v692
  %905 = vmatpush1.bf16.msra.mxu0 %v691
  %906 = vmatprep.mubr.bf16.mxu0 %v170
  %907 = vmatmul.mubr.bf16.gmra.mrb[0].mxu0 %v169
  %v908 = vpop.f32.mrb[0].mxu0
  %v909 = vadd.f32 %v858, %v908
  %v910 = vpop.f32.mrb[0].mxu0
  %v911 = vadd.f32 %v860, %v910
  %v912 = vpop.f32.mrb[0].mxu0
  %v913 = vadd.f32 %v862, %v912
  %v914 = vpop.f32.mrb[0].mxu0
  %v915 = vadd.f32 %v864, %v914
  %916 = vmatprep.mubr.bf16.mxu0 %v174
  %917 = vmatmul.mubr.bf16.gmra.mrb[0].mxu0 %v173
  %v918 = vpop.f32.mrb[0].mxu0
  %v919 = vadd.f32 %v868, %v918
  %v920 = vpop.f32.mrb[0].mxu0
  %v921 = vadd.f32 %v870, %v920
  %v922 = vpop.f32.mrb[0].mxu0
  %v923 = vpop.f32.mrb[0].mxu0
  %924 = vdwg.mxu0
  %925 = vmatprep.subr.bf16.mxu0 %v570
  %926 = vmatpush1.bf16.msra.mxu0 %v569
  %927 = vmatprep.subr.bf16.mxu0 %v574
  %928 = vmatpush1.bf16.msra.mxu0 %v573
  %929 = vmatprep.subr.bf16.mxu0 %v578
  %930 = vmatpush1.bf16.msra.mxu0 %v577
  %931 = vmatprep.subr.bf16.mxu0 %v582
  %932 = vmatpush1.bf16.msra.mxu0 %v581
  %933 = vmatprep.subr.bf16.mxu0 %v586
  %934 = vmatpush1.bf16.msra.mxu0 %v585
  %935 = vmatprep.subr.bf16.mxu0 %v590
  %936 = vmatpush1.bf16.msra.mxu0 %v589
  %937 = vmatprep.subr.bf16.mxu0 %v594
  %938 = vmatpush1.bf16.msra.mxu0 %v593
  %939 = vmatprep.subr.bf16.mxu0 %v598
  %940 = vmatpush1.bf16.msra.mxu0 %v597
  %941 = vmatprep.subr.bf16.mxu0 %v602
  %942 = vmatpush1.bf16.msra.mxu0 %v601
  %943 = vmatprep.subr.bf16.mxu0 %v606
  %944 = vmatpush1.bf16.msra.mxu0 %v605
  %945 = vmatprep.subr.bf16.mxu0 %v610
  %946 = vmatpush1.bf16.msra.mxu0 %v609
  %947 = vmatprep.subr.bf16.mxu0 %v614
  %948 = vmatpush1.bf16.msra.mxu0 %v613
  %949 = vmatprep.subr.bf16.mxu0 %v618
  %950 = vmatpush1.bf16.msra.mxu0 %v617
  %951 = vmatprep.subr.bf16.mxu0 %v622
  %952 = vmatpush1.bf16.msra.mxu0 %v621
  %953 = vmatprep.subr.bf16.mxu0 %v626
  %954 = vmatpush1.bf16.msra.mxu0 %v625
  %955 = vmatprep.subr.bf16.mxu0 %v630
  %956 = vmatpush1.bf16.msra.mxu0 %v629
  %957 = vmatprep.mubr.bf16.mxu0 %v168
  %958 = vmatmul.mubr.bf16.gmra.mrb[0].mxu0 %v167
  %v959 = vpop.f32.mrb[0].mxu0
  %v960 = vadd.f32 0.0, %v959
  %v961 = vpop.f32.mrb[0].mxu0
  %v962 = vadd.f32 0.0, %v961
  %v963 = vpop.f32.mrb[0].mxu0
  %v964 = vadd.f32 0.0, %v963
  %v965 = vpop.f32.mrb[0].mxu0
  %v966 = vadd.f32 0.0, %v965
  %967 = vmatprep.mubr.bf16.mxu0 %v172
  %968 = vmatmul.mubr.bf16.gmra.mrb[0].mxu0 %v171
  %v969 = vpop.f32.mrb[0].mxu0
  %v970 = vadd.f32 0.0, %v969
  %v971 = vpop.f32.mrb[0].mxu0
  %v972 = vadd.f32 0.0, %v971
  %v973 = vpop.f32.mrb[0].mxu0
  %v974 = vpop.f32.mrb[0].mxu0
  %975 = vdwg.mxu0
  %976 = vmatprep.subr.bf16.mxu0 %v634
  %977 = vmatpush1.bf16.msra.mxu0 %v633
  %978 = vmatprep.subr.bf16.mxu0 %v638
  %979 = vmatpush1.bf16.msra.mxu0 %v637
  %980 = vmatprep.subr.bf16.mxu0 %v642
  %981 = vmatpush1.bf16.msra.mxu0 %v641
  %982 = vmatprep.subr.bf16.mxu0 %v646
  %983 = vmatpush1.bf16.msra.mxu0 %v645
  %984 = vmatprep.subr.bf16.mxu0 %v650
  %985 = vmatpush1.bf16.msra.mxu0 %v649
  %986 = vmatprep.subr.bf16.mxu0 %v654
  %987 = vmatpush1.bf16.msra.mxu0 %v653
  %988 = vmatprep.subr.bf16.mxu0 %v658
  %989 = vmatpush1.bf16.msra.mxu0 %v657
  %990 = vmatprep.subr.bf16.mxu0 %v662
  %991 = vmatpush1.bf16.msra.mxu0 %v661
  %992 = vmatprep.subr.bf16.mxu0 %v666
  %993 = vmatpush1.bf16.msra.mxu0 %v665
  %994 = vmatprep.subr.bf16.mxu0 %v670
  %995 = vmatpush1.bf16.msra.mxu0 %v669
  %996 = vmatprep.subr.bf16.mxu0 %v674
  %997 = vmatpush1.bf16.msra.mxu0 %v673
  %998 = vmatprep.subr.bf16.mxu0 %v678
  %999 = vmatpush1.bf16.msra.mxu0 %v677
  %1000 = vmatprep.subr.bf16.mxu0 %v682
  %1001 = vmatpush1.bf16.msra.mxu0 %v681
  %1002 = vmatprep.subr.bf16.mxu0 %v686
  %1003 = vmatpush1.bf16.msra.mxu0 %v685
  %1004 = vmatprep.subr.bf16.mxu0 %v690
  %1005 = vmatpush1.bf16.msra.mxu0 %v689
  %1006 = vmatprep.subr.bf16.mxu0 %v694
  %1007 = vmatpush1.bf16.msra.mxu0 %v693
  %1008 = vmatprep.mubr.bf16.mxu0 %v170
  %1009 = vmatmul.mubr.bf16.gmra.mrb[0].mxu0 %v169
  %v1010 = vpop.f32.mrb[0].mxu0
  %v1011 = vadd.f32 %v960, %v1010
  %v1012 = vpop.f32.mrb[0].mxu0
  %v1013 = vadd.f32 %v962, %v1012
  %v1014 = vpop.f32.mrb[0].mxu0
  %v1015 = vadd.f32 %v964, %v1014
  %v1016 = vpop.f32.mrb[0].mxu0
  %v1017 = vadd.f32 %v966, %v1016
  %1018 = vmatprep.mubr.bf16.mxu0 %v174
  %1019 = vmatmul.mubr.bf16.gmra.mrb[0].mxu0 %v173
  %v1020 = vpop.f32.mrb[0].mxu0
  %v1021 = vadd.f32 %v970, %v1020
  %v1022 = vpop.f32.mrb[0].mxu0
  %v1023 = vadd.f32 %v972, %v1022
  %v1024 = vpop.f32.mrb[0].mxu0
  %v1025 = vpop.f32.mrb[0].mxu0
  %1026 = vdwg.mxu0
  %v1027 = vmul.f32 %v909, %v909
  %v1028 = vmul.f32 %v911, %v911
  %v1029 = vmul.f32 %v913, %v913
  %v1030 = vmul.f32 %v915, %v915
  %v1031 = vmul.f32 %v919, %v919
  %v1032 = vmul.f32 %v921, %v921
  %v1033 = vmul.f32 %v1011, %v1011
  %v1034 = vmul.f32 %v1013, %v1013
  %v1035 = vmul.f32 %v1015, %v1015
  %v1036 = vmul.f32 %v1017, %v1017
  %v1037 = vmul.f32 %v1021, %v1021
  %v1038 = vmul.f32 %v1023, %v1023
  %v1039 = vadd.f32 %v1027, %v1033
  %v1040 = vadd.f32 %v1028, %v1034
  %v1041 = vadd.f32 %v1029, %v1035
  %v1042 = vadd.f32 %v1030, %v1036
  %v1043 = vadd.f32 %v1031, %v1037
  %v1044 = vadd.f32 %v1032, %v1038
  %v1045 = vpack.c.bf16 %v1041, %v1039
  %v1046 = vpack.c.bf16 %v1042, %v1040
  %v1047 = vpack.c.bf16 %v1043, %v1043
  %v1048 = vpack.c.bf16 %v1044, %v1044
  %v1049 = vld [vmem:[%s2] sm:$0xf]
  %v1050 = vld [vmem:[%s2 + $0x4] sm:$0xf]
  %v1051 = vld [vmem:[%s2 + $0x8] sm:$0xf]
  %v1052 = vld [vmem:[%s2 + $0xc] sm:$0xf]
  %v1053 = vld [vmem:[%s2 + $0x10] sm:$0xf]
  %v1054 = vld [vmem:[%s2 + $0x14] sm:$0xf]
  %v1055 = vld [vmem:[%s2 + $0x18] sm:$0xf]
  %v1056 = vld [vmem:[%s2 + $0x1c] sm:$0xf]
  %v1057 = vld [vmem:[%s2 + $0x20] sm:$0xf]
  %v1058 = vld [vmem:[%s2 + $0x24] sm:$0xf]
  %v1059 = vld [vmem:[%s2 + $0x28] sm:$0xf]
  %v1060 = vld [vmem:[%s2 + $0x2c] sm:$0xf]
  %v1061 = vld [vmem:[%s2 + $0x30] sm:$0xf]
  %v1062 = vld [vmem:[%s2 + $0x34] sm:$0xf]
  %v1063 = vld [vmem:[%s2 + $0x38] sm:$0xf]
  %v1064 = vld [vmem:[%s2 + $0x3c] sm:$0xf]
  %v1065 = vld [vmem:[%s2 + $0x40] sm:$0xf]
  %v1066 = vld [vmem:[%s2 + $0x44] sm:$0xf]
  %v1067 = vld [vmem:[%s2 + $0x48] sm:$0xf]
  %v1068 = vld [vmem:[%s2 + $0x4c] sm:$0xf]
  %v1069 = vld [vmem:[%s2 + $0x50] sm:$0xf]
  %v1070 = vld [vmem:[%s2 + $0x54] sm:$0xf]
  %v1071 = vld [vmem:[%s2 + $0x58] sm:$0xf]
  %v1072 = vld [vmem:[%s2 + $0x5c] sm:$0xf]
  %v1073 = vld [vmem:[%s2 + $0x60] sm:$0xf]
  %v1074 = vld [vmem:[%s2 + $0x64] sm:$0xf]
  %v1075 = vld [vmem:[%s2 + $0x68] sm:$0xf]
  %v1076 = vld [vmem:[%s2 + $0x6c] sm:$0xf]
  %v1077 = vld [vmem:[%s2 + $0x70] sm:$0xf]
  %v1078 = vld [vmem:[%s2 + $0x74] sm:$0xf]
  %v1079 = vld [vmem:[%s2 + $0x78] sm:$0xf]
  %v1080 = vld [vmem:[%s2 + $0x7c] sm:$0xf]
  %v1113 = vunpack.c.l.b16 %v1049
  %v1114 = vunpack.c.l.b16 %v1050
  %v1115 = vunpack.c.l.b16 %v1051
  %v1116 = vunpack.c.l.b16 %v1052
  %v1117 = vunpack.c.l.b16 %v1053
  %v1118 = vunpack.c.l.b16 %v1054
  %v1119 = vunpack.c.l.b16 %v1055
  %v1120 = vunpack.c.l.b16 %v1056
  %v1121 = vunpack.c.l.b16 %v1057
  %v1122 = vunpack.c.l.b16 %v1058
  %v1123 = vunpack.c.l.b16 %v1059
  %v1124 = vunpack.c.l.b16 %v1060
  %v1125 = vunpack.c.l.b16 %v1061
  %v1126 = vunpack.c.l.b16 %v1062
  %v1127 = vunpack.c.l.b16 %v1063
  %v1128 = vunpack.c.l.b16 %v1064
  %v1129 = vunpack.c.l.b16 %v1065
  %v1130 = vunpack.c.l.b16 %v1066
  %v1131 = vunpack.c.l.b16 %v1067
  %v1132 = vunpack.c.l.b16 %v1068
  %v1133 = vunpack.c.l.b16 %v1069
  %v1134 = vunpack.c.l.b16 %v1070
  %v1135 = vunpack.c.l.b16 %v1071
  %v1136 = vunpack.c.l.b16 %v1072
  %v1137 = vunpack.c.l.b16 %v1073
  %v1138 = vunpack.c.l.b16 %v1074
  %v1139 = vunpack.c.l.b16 %v1075
  %v1140 = vunpack.c.l.b16 %v1076
  %v1141 = vunpack.c.l.b16 %v1077
  %v1142 = vunpack.c.l.b16 %v1078
  %v1143 = vunpack.c.l.b16 %v1079
  %v1144 = vunpack.c.l.b16 %v1080
  %v1145 = vpack.c.b16 %v1114, %v1113
  %v1146 = vpack.c.b16 %v1116, %v1115
  %v1147 = vpack.c.b16 %v1118, %v1117
  %v1148 = vpack.c.b16 %v1120, %v1119
  %v1149 = vpack.c.b16 %v1122, %v1121
  %v1150 = vpack.c.b16 %v1124, %v1123
  %v1151 = vpack.c.b16 %v1126, %v1125
  %v1152 = vpack.c.b16 %v1128, %v1127
  %v1153 = vpack.c.b16 %v1130, %v1129
  %v1154 = vpack.c.b16 %v1132, %v1131
  %v1155 = vpack.c.b16 %v1134, %v1133
  %v1156 = vpack.c.b16 %v1136, %v1135
  %v1157 = vpack.c.b16 %v1138, %v1137
  %v1158 = vpack.c.b16 %v1140, %v1139
  %v1159 = vpack.c.b16 %v1142, %v1141
  %v1160 = vpack.c.b16 %v1144, %v1143
  %1177 = vmatprep.subr.bf16.mxu0 0
  %1178 = vmatpush1.bf16.msra.mxu0 %v1145
  %1179 = vmatprep.subr.bf16.mxu0 0
  %1180 = vmatpush1.bf16.msra.mxu0 %v1146
  %1181 = vmatprep.subr.bf16.mxu0 0
  %1182 = vmatpush1.bf16.msra.mxu0 %v1147
  %1183 = vmatprep.subr.bf16.mxu0 0
  %1184 = vmatpush1.bf16.msra.mxu0 %v1148
  %1185 = vmatprep.subr.bf16.mxu0 0
  %1186 = vmatpush1.bf16.msra.mxu0 %v1149
  %1187 = vmatprep.subr.bf16.mxu0 0
  %1188 = vmatpush1.bf16.msra.mxu0 %v1150
  %1189 = vmatprep.subr.bf16.mxu0 0
  %1190 = vmatpush1.bf16.msra.mxu0 %v1151
  %1191 = vmatprep.subr.bf16.mxu0 0
  %1192 = vmatpush1.bf16.msra.mxu0 %v1152
  %1193 = vmatprep.subr.bf16.mxu0 0
  %1194 = vmatpush1.bf16.msra.mxu0 %v1153
  %1195 = vmatprep.subr.bf16.mxu0 0
  %1196 = vmatpush1.bf16.msra.mxu0 %v1154
  %1197 = vmatprep.subr.bf16.mxu0 0
  %1198 = vmatpush1.bf16.msra.mxu0 %v1155
  %1199 = vmatprep.subr.bf16.mxu0 0
  %1200 = vmatpush1.bf16.msra.mxu0 %v1156
  %1201 = vmatprep.subr.bf16.mxu0 0
  %1202 = vmatpush1.bf16.msra.mxu0 %v1157
  %1203 = vmatprep.subr.bf16.mxu0 0
  %1204 = vmatpush1.bf16.msra.mxu0 %v1158
  %1205 = vmatprep.subr.bf16.mxu0 0
  %1206 = vmatpush1.bf16.msra.mxu0 %v1159
  %1207 = vmatprep.subr.bf16.mxu0 0
  %1208 = vmatpush1.bf16.msra.mxu0 %v1160
  %1209 = vmatprep.mubr.bf16.mxu0 %v1046
  %1210 = vmatmul.mubr.bf16.gmra.mrb[0].mxu0 %v1045
  %v1211 = vpop.f32.mrb[0].mxu0
  %v1212 = vadd.f32 0.0, %v1211
  %v1213 = vpop.f32.mrb[0].mxu0
  %v1214 = vpop.f32.mrb[0].mxu0
  %v1215 = vadd.f32 0.0, %v1214
  %v1216 = vpop.f32.mrb[0].mxu0
  %1217 = vmatprep.mubr.bf16.mxu0 %v1048
  %1218 = vmatmul.mubr.bf16.gmra.mrb[0].mxu0 %v1047
  %v1219 = vpop.f32.mrb[0].mxu0
  %v1220 = vadd.f32 0.0, %v1219
  %v1221 = vpop.f32.mrb[0].mxu0
  %v1222 = vpop.f32.mrb[0].mxu0
  %v1223 = vpop.f32.mrb[0].mxu0
  %1224 = vdwg.mxu0
  %1225 = vst [vmem:[%s3] sm:$0xff] %v1212
  %1226 = vst [vmem:[%s3 + $0x8] sm:$0xff] %v1215
  %1227 = vst [vmem:[%s3 + $0x10] sm:$0xff] %v1220
  // Predicated region
  $region14: #{mel_spectrogram.1} parent=0 // pred_check
    _
  $region15: #{mel_spectrogram.1} parent=0 // pred_check_branch
    %1229 = sbr.rel (0) target = $region17
  $region16: #{mel_spectrogram.1} parent=0 // pred_region
    _
  $region17: #{mel_spectrogram.1} parent=0 // pred_fallthru
    _
  // Predicated region
  $region18: #{mel_spectrogram.1} parent=0 // pred_check
    _
  $region19: #{mel_spectrogram.1} parent=0 // pred_check_branch
    %1231 = sbr.rel (0) target = $region21
  $region20: #{mel_spectrogram.1} parent=0 // pred_region
    _
  $region21: #{mel_spectrogram.1} parent=0 // pred_fallthru
    _

</llo_original>
